<compile_context>
chip_gen: v5e
topology: v5e:2x2
jax: 0.10.0
libtpu: 0.0.40
codegen_flags: <defaults>
</compile_context>

<pallas_src>
import jax
import jax.numpy as jnp
from jax import lax
from jax.experimental import pallas as pl
from jax.experimental.pallas import tpu as pltpu

# ---- model dimensions (Sim pencil game: 15 edges, 3-way one-hot, 15 actions) ----
NUM_EDGES = 15
ONE_HOT = 3
INPUT_SIZE = NUM_EDGES * ONE_HOT        # 45
HIDDEN = 256
ACTION_SIZE = NUM_EDGES                 # game.getActionSize() == 15 for Sim

K_PAD = 48                              # fc1 contraction dim padded 45 -> 48 (bf16 sublane aligned)
HEAD_PAD = 128                          # fused value(1)+policy(15) head padded to 128 lanes
VALUE_COL = 0                           # value at lane 0, policy logits at lanes 1..15


def _round_up(x, m):
    return ((x + m - 1) // m) * m


def _sim_nn_kernel(x_ref,
                   w1_ref, b1_ref,
                   w2_ref, b2_ref,
                   w3_ref, b3_ref,
                   wh_ref, bh_ref,
                   out_ref):
    """One batch tile: 3x (bf16 MXU matmul + f32 bias/relu) + fused head.

    out_ref columns: [0] = tanh(value), [1:16] = raw policy logits, rest = zero pad.
    """
    h = jnp.dot(x_ref[...], w1_ref[...], preferred_element_type=jnp.float32) + b1_ref[...]
    h = jnp.maximum(h, 0.0).astype(jnp.bfloat16)

    h = jnp.dot(h, w2_ref[...], preferred_element_type=jnp.float32) + b2_ref[...]
    h = jnp.maximum(h, 0.0).astype(jnp.bfloat16)

    h = jnp.dot(h, w3_ref[...], preferred_element_type=jnp.float32) + b3_ref[...]
    h = jnp.maximum(h, 0.0).astype(jnp.bfloat16)

    # Fused value+policy head: single (256, 128) matmul, f32 accumulate.
    head = jnp.dot(h, wh_ref[...], preferred_element_type=jnp.float32) + bh_ref[...]

    # tanh only on the value column (lane 0): 128x fewer EUP transcendentals than
    # applying it to the whole (tb, 128) tile.
    v = jnp.tanh(head[:, VALUE_COL:VALUE_COL + 1])                         # (tb, 1)
    col = lax.broadcasted_iota(jnp.int32, head.shape, 1)
    # Single lane-dense, unmasked bf16 store of the whole tile.
    out_ref[...] = jnp.where(col == VALUE_COL, v, head).astype(jnp.bfloat16)


def sim_nn_forward(x, packed_params, tile_b=4096):
    """x: (B, 15, 3) float one-hot.  Returns (pi, v) = ((B, 15), (B, 1)) in f32."""
    B = x.shape[0]
    (w1, b1, w2, b2, w3, b3, wh, bh) = packed_params

    # Batch tile: multiple of 16 (bf16 packs (16,128) per vreg); cap at ceil(B/2)
    # rounded up so the grid has >= 2 steps when B allows (dual-TC v7x); never
    # exceed tile_b (VMEM safety on v7x's 64 MiB).
    half_b = _round_up(max(1, -(-B // 2)), 16)
    tb = max(16, min((int(tile_b) // 16) * 16, half_b))
    B_pad = _round_up(B, tb)

    # reshape + bf16 cast + ONE pad (features 45->48 AND batch B->B_pad together).
    # Under jit XLA fuses this into a single pass.  Padded weight rows / batch rows
    # are zero, so the padded matmul is numerically exact.
    x_in = jnp.pad(x.reshape(B, INPUT_SIZE).astype(jnp.bfloat16),
                   ((0, B_pad - B), (0, K_PAD - INPUT_SIZE)))

    grid = (B_pad // tb,)

    # Weights/biases: constant index maps -> stay VMEM-resident across grid steps.
    const = lambda shape: pl.BlockSpec(shape, lambda i: (0, 0))

    out = pl.pallas_call(
        _sim_nn_kernel,
        out_shape=jax.ShapeDtypeStruct((B_pad, HEAD_PAD), jnp.bfloat16),
        grid_spec=pltpu.PrefetchScalarGridSpec(
            num_scalar_prefetch=0,
            grid=grid,
            in_specs=[
                pl.BlockSpec((tb, K_PAD), lambda i: (i, 0)),               # x tile
                const(w1.shape), const(b1.shape),
                const(w2.shape), const(b2.shape),
                const(w3.shape), const(b3.shape),
                const(wh.shape), const(bh.shape),
            ],
            out_specs=pl.BlockSpec((tb, HEAD_PAD), lambda i: (i, 0)),
        ),
        compiler_params=pltpu.CompilerParams(
            dimension_semantics=("parallel",),        # batch tiles are independent
            vmem_limit_bytes=48 * 1024 * 1024,        # headroom, still < v7x 64 MiB physical
        ),
    )(x_in, w1, b1, w2, b2, w3, b3, wh, bh)

    head = out[:B].astype(jnp.float32)                                     # drop padded rows
    v = head[:, VALUE_COL:VALUE_COL + 1]                                   # (B, 1), tanh'd in kernel
    logits = head[:, 1:1 + ACTION_SIZE]                                    # (B, 15) raw policy logits

    # log_softmax over dim=0 (batch), exactly as in the PyTorch module.  Batch-global
    # reduction -> computed here over the REAL rows only.
    pi = jax.nn.log_softmax(logits, axis=0)
    return pi, v


def init_params(key):
    """PyTorch-Linear-style uniform +-1/sqrt(fan_in) init.  f32, W (in,out), b (1,out)."""
    def linear(key, fan_in, fan_out):
        kw, kb = jax.random.split(key)
        bound = 1.0 / jnp.sqrt(fan_in)
        w = jax.random.uniform(kw, (fan_in, fan_out), jnp.float32, -bound, bound)
        b = jax.random.uniform(kb, (1, fan_out), jnp.float32, -bound, bound)
        return w, b

    keys = jax.random.split(key, 5)
    w1, b1 = linear(keys[0], INPUT_SIZE, HIDDEN)
    w2, b2 = linear(keys[1], HIDDEN, HIDDEN)
    w3, b3 = linear(keys[2], HIDDEN, HIDDEN)
    wp, bp = linear(keys[3], HIDDEN, ACTION_SIZE)
    wv, bv = linear(keys[4], HIDDEN, 1)
    return (w1, b1, w2, b2, w3, b3, wp, bp, wv, bv)


def pack_params(params):
    """Kernel layout: fc1 rows padded 45->48, value+policy head fused into 128 lanes
    (value at col 0, policy at cols 1..15), bf16 MXU weights, f32 biases.  All padding
    is zero in BOTH weight and bias, so padded matmuls equal the un-padded ones."""
    (w1, b1, w2, b2, w3, b3, wp, bp, wv, bv) = params

    w1p = jnp.zeros((K_PAD, HIDDEN), jnp.float32).at[:INPUT_SIZE].set(w1)

    wh = jnp.zeros((HIDDEN, HEAD_PAD), jnp.float32)
    wh = wh.at[:, VALUE_COL:VALUE_COL + 1].set(wv)
    wh = wh.at[:, 1:1 + ACTION_SIZE].set(wp)
    bh = jnp.zeros((1, HEAD_PAD), jnp.float32)
    bh = bh.at[:, VALUE_COL:VALUE_COL + 1].set(bv)
    bh = bh.at[:, 1:1 + ACTION_SIZE].set(bp)

    bf16 = lambda a: a.astype(jnp.bfloat16)
    return (bf16(w1p), b1, bf16(w2), b2, bf16(w3), b3, bf16(wh), bh)


def _reference_forward(x, params):
    """Pure-JAX reference modelling the SAME quantization as the kernel:
    bf16 matmul operands, f32 accumulate/bias/relu, bf16 rounding of the stored head."""
    (w1, b1, w2, b2, w3, b3, wp, bp, wv, bv) = params

    def mm(a, w):
        return jnp.dot(a.astype(jnp.bfloat16), w.astype(jnp.bfloat16),
                       preferred_element_type=jnp.float32)

    h = x.reshape(x.shape[0], -1)
    h = jnp.maximum(mm(h, w1) + b1, 0.0)
    h = jnp.maximum(mm(h, w2) + b2, 0.0)
    h = jnp.maximum(mm(h, w3) + b3, 0.0)
    logits = (mm(h, wp) + bp).astype(jnp.bfloat16).astype(jnp.float32)
    pi = jax.nn.log_softmax(logits, axis=0)                 # dim=0, as in torch code
    v = jnp.tanh(mm(h, wv) + bv).astype(jnp.bfloat16).astype(jnp.float32)
    return pi, v


if __name__ == "__main__":
    key = jax.random.PRNGKey(0)
    k_params, k_edges = jax.random.split(key)

    params = init_params(k_params)
    packed = pack_params(params)

    # Small deterministic batch of one-hot (15, 3) board encodings.
    B = 2
    edge_states = jax.random.randint(k_edges, (B, NUM_EDGES), 0, ONE_HOT)
    x = jax.nn.one_hot(edge_states, ONE_HOT, dtype=jnp.float32)           # (B, 15, 3)

    forward = jax.jit(lambda xx, pp: sim_nn_forward(xx, pp))
    pi, v = forward(x, packed)
    jax.block_until_ready((pi, v))

    pi_ref, v_ref = _reference_forward(x, params)
    assert pi.shape == (B, ACTION_SIZE) and v.shape == (B, 1)
    # Tolerance covers one bf16 rounding of the stored head (~2^-8 relative) on top of
    # possible MXU accumulation-order differences.
    assert jnp.allclose(pi, pi_ref, atol=5e-3, rtol=5e-3), (
        float(jnp.max(jnp.abs(pi - pi_ref))))
    assert jnp.allclose(v, v_ref, atol=5e-3, rtol=5e-3), (
        float(jnp.max(jnp.abs(v - v_ref))))

    print("KERNEL_OK")
</pallas_src>

<mosaic_0001>
module attributes {stable_mosaic.version = 11 : i64} {
  func.func @_sim_nn_kernel(%arg0: i32, %arg1: memref<16x48xbf16, #tpu.memory_space<vmem>>, %arg2: memref<48x256xbf16, #tpu.memory_space<vmem>>, %arg3: memref<1x256xf32, #tpu.memory_space<vmem>>, %arg4: memref<256x256xbf16, #tpu.memory_space<vmem>>, %arg5: memref<1x256xf32, #tpu.memory_space<vmem>>, %arg6: memref<256x256xbf16, #tpu.memory_space<vmem>>, %arg7: memref<1x256xf32, #tpu.memory_space<vmem>>, %arg8: memref<256x128xbf16, #tpu.memory_space<vmem>>, %arg9: memref<1x128xf32, #tpu.memory_space<vmem>>, %arg10: memref<16x128xbf16, #tpu.memory_space<vmem>>) attributes {dimension_semantics = [#tpu.dimension_semantics<parallel>], iteration_bounds = array<i64: 1>, scalar_prefetch = 0 : i64, scratch_operands = 0 : i64, tpu.core_type = #tpu.core_type<tc>, window_params = [{transform_indices = @transform_0, window_bounds = array<i64: 16, 48>}, {pipeline_mode = #tpu.pipeline_mode<synchronous>, transform_indices = @transform_1, window_bounds = array<i64: 48, 256>}, {pipeline_mode = #tpu.pipeline_mode<synchronous>, transform_indices = @transform_2, window_bounds = array<i64: 1, 256>}, {pipeline_mode = #tpu.pipeline_mode<synchronous>, transform_indices = @transform_3, window_bounds = array<i64: 256, 256>}, {pipeline_mode = #tpu.pipeline_mode<synchronous>, transform_indices = @transform_4, window_bounds = array<i64: 1, 256>}, {pipeline_mode = #tpu.pipeline_mode<synchronous>, transform_indices = @transform_5, window_bounds = array<i64: 256, 256>}, {pipeline_mode = #tpu.pipeline_mode<synchronous>, transform_indices = @transform_6, window_bounds = array<i64: 1, 256>}, {pipeline_mode = #tpu.pipeline_mode<synchronous>, transform_indices = @transform_7, window_bounds = array<i64: 256, 128>}, {pipeline_mode = #tpu.pipeline_mode<synchronous>, transform_indices = @transform_8, window_bounds = array<i64: 1, 128>}, {transform_indices = @transform_9, window_bounds = array<i64: 16, 128>}]} {
    %c0 = arith.constant 0 : index
    %c0_0 = arith.constant 0 : index
    %0 = vector.load %arg1[%c0, %c0_0] : memref<16x48xbf16, #tpu.memory_space<vmem>>, vector<16x48xbf16>
    %c0_1 = arith.constant 0 : index
    %c0_2 = arith.constant 0 : index
    %1 = vector.load %arg2[%c0_1, %c0_2] : memref<48x256xbf16, #tpu.memory_space<vmem>>, vector<48x256xbf16>
    %cst = arith.constant dense<0.000000e+00> : vector<16x256xf32>
    %2 = tpu.matmul %0, %1, %cst {dimension_numbers = #tpu.dot_dimension_numbers<[1], [0], [0], [1], [0, 0, 1, 1], [], []>} : vector<16x48xbf16>, vector<48x256xbf16>, vector<16x256xf32> -> vector<16x256xf32>
    %c0_3 = arith.constant 0 : index
    %c0_4 = arith.constant 0 : index
    %3 = vector.load %arg3[%c0_3, %c0_4] : memref<1x256xf32, #tpu.memory_space<vmem>>, vector<1x256xf32>
    %4 = vector.broadcast %3 : vector<1x256xf32> to vector<16x256xf32>
    %5 = arith.addf %2, %4 : vector<16x256xf32>
    %cst_5 = arith.constant 0.000000e+00 : f32
    %6 = vector.broadcast %cst_5 : f32 to vector<16x256xf32>
    %7 = arith.maximumf %5, %6 : vector<16x256xf32>
    %8 = arith.truncf %7 : vector<16x256xf32> to vector<16x256xbf16>
    %c0_6 = arith.constant 0 : index
    %c0_7 = arith.constant 0 : index
    %9 = vector.load %arg4[%c0_6, %c0_7] : memref<256x256xbf16, #tpu.memory_space<vmem>>, vector<256x256xbf16>
    %cst_8 = arith.constant dense<0.000000e+00> : vector<16x256xf32>
    %10 = tpu.matmul %8, %9, %cst_8 {dimension_numbers = #tpu.dot_dimension_numbers<[1], [0], [0], [1], [0, 0, 1, 1], [], []>} : vector<16x256xbf16>, vector<256x256xbf16>, vector<16x256xf32> -> vector<16x256xf32>
    %c0_9 = arith.constant 0 : index
    %c0_10 = arith.constant 0 : index
    %11 = vector.load %arg5[%c0_9, %c0_10] : memref<1x256xf32, #tpu.memory_space<vmem>>, vector<1x256xf32>
    %12 = vector.broadcast %11 : vector<1x256xf32> to vector<16x256xf32>
    %13 = arith.addf %10, %12 : vector<16x256xf32>
    %cst_11 = arith.constant 0.000000e+00 : f32
    %14 = vector.broadcast %cst_11 : f32 to vector<16x256xf32>
    %15 = arith.maximumf %13, %14 : vector<16x256xf32>
    %16 = arith.truncf %15 : vector<16x256xf32> to vector<16x256xbf16>
    %c0_12 = arith.constant 0 : index
    %c0_13 = arith.constant 0 : index
    %17 = vector.load %arg6[%c0_12, %c0_13] : memref<256x256xbf16, #tpu.memory_space<vmem>>, vector<256x256xbf16>
    %cst_14 = arith.constant dense<0.000000e+00> : vector<16x256xf32>
    %18 = tpu.matmul %16, %17, %cst_14 {dimension_numbers = #tpu.dot_dimension_numbers<[1], [0], [0], [1], [0, 0, 1, 1], [], []>} : vector<16x256xbf16>, vector<256x256xbf16>, vector<16x256xf32> -> vector<16x256xf32>
    %c0_15 = arith.constant 0 : index
    %c0_16 = arith.constant 0 : index
    %19 = vector.load %arg7[%c0_15, %c0_16] : memref<1x256xf32, #tpu.memory_space<vmem>>, vector<1x256xf32>
    %20 = vector.broadcast %19 : vector<1x256xf32> to vector<16x256xf32>
    %21 = arith.addf %18, %20 : vector<16x256xf32>
    %cst_17 = arith.constant 0.000000e+00 : f32
    %22 = vector.broadcast %cst_17 : f32 to vector<16x256xf32>
    %23 = arith.maximumf %21, %22 : vector<16x256xf32>
    %24 = arith.truncf %23 : vector<16x256xf32> to vector<16x256xbf16>
    %c0_18 = arith.constant 0 : index
    %c0_19 = arith.constant 0 : index
    %25 = vector.load %arg8[%c0_18, %c0_19] : memref<256x128xbf16, #tpu.memory_space<vmem>>, vector<256x128xbf16>
    %cst_20 = arith.constant dense<0.000000e+00> : vector<16x128xf32>
    %26 = tpu.matmul %24, %25, %cst_20 {dimension_numbers = #tpu.dot_dimension_numbers<[1], [0], [0], [1], [0, 0, 1, 1], [], []>} : vector<16x256xbf16>, vector<256x128xbf16>, vector<16x128xf32> -> vector<16x128xf32>
    %c0_21 = arith.constant 0 : index
    %c0_22 = arith.constant 0 : index
    %27 = vector.load %arg9[%c0_21, %c0_22] : memref<1x128xf32, #tpu.memory_space<vmem>>, vector<1x128xf32>
    %28 = vector.broadcast %27 : vector<1x128xf32> to vector<16x128xf32>
    %29 = arith.addf %26, %28 : vector<16x128xf32>
    %30 = vector.extract_strided_slice %29 {offsets = [0, 0], sizes = [16, 1], strides = [1, 1]} : vector<16x128xf32> to vector<16x1xf32>
    %31 = math.tanh %30 : vector<16x1xf32>
    %32 = tpu.iota {dimensions = array<i32: 1>} : vector<16x128xi32>
    %c0_i32 = arith.constant 0 : i32
    %33 = vector.broadcast %c0_i32 : i32 to vector<16x128xi32>
    %34 = arith.cmpi eq, %32, %33 : vector<16x128xi32>
    %35 = vector.shape_cast %31 : vector<16x1xf32> to vector<16x1xf32>
    %36 = vector.broadcast %35 : vector<16x1xf32> to vector<16x128xf32>
    %37 = arith.select %34, %36, %29 : vector<16x128xi1>, vector<16x128xf32>
    %38 = arith.truncf %37 : vector<16x128xf32> to vector<16x128xbf16>
    %c0_23 = arith.constant 0 : index
    %c0_24 = arith.constant 0 : index
    %39 = vector.load %arg10[%c0_23, %c0_24] : memref<16x128xbf16, #tpu.memory_space<vmem>>, vector<16x128xbf16>
    tpu.vector_store %arg10[%c0_23, %c0_24], %38 {strides = array<i32>} : memref<16x128xbf16, #tpu.memory_space<vmem>>, vector<16x128xbf16>,
    return
  }
  func.func @transform_0(%arg0: i32) -> (i32, i32) {
    %c0_i32 = arith.constant 0 : i32
    %c0_i32_0 = arith.constant 0 : i32
    return %arg0, %c0_i32 : i32, i32
  }
  func.func @transform_1(%arg0: i32) -> (i32, i32) {
    %c0_i32 = arith.constant 0 : i32
    %c0_i32_0 = arith.constant 0 : i32
    %c0_i32_1 = arith.constant 0 : i32
    return %c0_i32, %c0_i32_0 : i32, i32
  }
  func.func @transform_2(%arg0: i32) -> (i32, i32) {
    %c0_i32 = arith.constant 0 : i32
    %c0_i32_0 = arith.constant 0 : i32
    %c0_i32_1 = arith.constant 0 : i32
    return %c0_i32, %c0_i32_0 : i32, i32
  }
  func.func @transform_3(%arg0: i32) -> (i32, i32) {
    %c0_i32 = arith.constant 0 : i32
    %c0_i32_0 = arith.constant 0 : i32
    %c0_i32_1 = arith.constant 0 : i32
    return %c0_i32, %c0_i32_0 : i32, i32
  }
  func.func @transform_4(%arg0: i32) -> (i32, i32) {
    %c0_i32 = arith.constant 0 : i32
    %c0_i32_0 = arith.constant 0 : i32
    %c0_i32_1 = arith.constant 0 : i32
    return %c0_i32, %c0_i32_0 : i32, i32
  }
  func.func @transform_5(%arg0: i32) -> (i32, i32) {
    %c0_i32 = arith.constant 0 : i32
    %c0_i32_0 = arith.constant 0 : i32
    %c0_i32_1 = arith.constant 0 : i32
    return %c0_i32, %c0_i32_0 : i32, i32
  }
  func.func @transform_6(%arg0: i32) -> (i32, i32) {
    %c0_i32 = arith.constant 0 : i32
    %c0_i32_0 = arith.constant 0 : i32
    %c0_i32_1 = arith.constant 0 : i32
    return %c0_i32, %c0_i32_0 : i32, i32
  }
  func.func @transform_7(%arg0: i32) -> (i32, i32) {
    %c0_i32 = arith.constant 0 : i32
    %c0_i32_0 = arith.constant 0 : i32
    %c0_i32_1 = arith.constant 0 : i32
    return %c0_i32, %c0_i32_0 : i32, i32
  }
  func.func @transform_8(%arg0: i32) -> (i32, i32) {
    %c0_i32 = arith.constant 0 : i32
    %c0_i32_0 = arith.constant 0 : i32
    %c0_i32_1 = arith.constant 0 : i32
    return %c0_i32, %c0_i32_0 : i32, i32
  }
  func.func @transform_9(%arg0: i32) -> (i32, i32) {
    %c0_i32 = arith.constant 0 : i32
    %c0_i32_0 = arith.constant 0 : i32
    return %arg0, %c0_i32 : i32, i32
  }
}

</mosaic_0001>

<llo_original>
// kernel: _lambda_.1
$region0: #{_lambda_.1}
  #allocation0 [shape = 'u32[]', space=smem, size = 0x4, offset = 0x4, fixed_abs, tag = 'smem constant byte address 0x4 - core index']
  #allocation1 [shape = 'u32[72,128]{1,0:T(1,128)}', space=vmem, size = 0x9000, scoped, tag = 'internal scratch']
  %s0 = inlined_call_operand.vmem [shape: bf16[16,48], index: 0, kind: input, shape index: {}]
  %s1 = inlined_call_operand.vmem [shape: bf16[48,256], index: 1, kind: input, shape index: {}]
  %s2 = inlined_call_operand.vmem [shape: f32[1,256], index: 2, kind: input, shape index: {}]
  %s3 = inlined_call_operand.hbm [shape: bf16[256,256], index: 3, kind: input, shape index: {}]
  %s4 = inlined_call_operand.vmem [shape: f32[1,256], index: 4, kind: input, shape index: {}]
  %s5 = inlined_call_operand.hbm [shape: bf16[256,256], index: 5, kind: input, shape index: {}]
  %s6 = inlined_call_operand.vmem [shape: f32[1,256], index: 6, kind: input, shape index: {}]
  %s7 = inlined_call_operand.hbm [shape: bf16[256,128], index: 7, kind: input, shape index: {}]
  %s8 = inlined_call_operand.vmem [shape: f32[1,128], index: 8, kind: input, shape index: {}]
  %s9 = inlined_call_operand.vmem [shape: bf16[16,128], index: 9, kind: output, shape index: {}]
  %s10 = sld [smem:[#allocation0]]
  $region58: #{_lambda_.1} parent=0
    _
  %s12 = ssub.s32 1, %s10
  %s13 = scalar_select 0, %s12, %s10
  $region1: #{_lambda_.1} parent=0
    #allocation2 [shape = 'u8[131072]{0}', space=vmem, size = 0x20000, scoped, tag = 'input window, operand 3, single buffered']
    #allocation3 [shape = 's32[1]{0}', space=sflag, size = 0x4, scoped, tag = 'scoped memory for _lambda_.1']
    #allocation4 [shape = 'u8[131072]{0}', space=vmem, size = 0x20000, scoped, tag = 'input window, operand 5, single buffered']
    #allocation5 [shape = 's32[1]{0}', space=sflag, size = 0x4, scoped, tag = 'scoped memory for _lambda_.1']
    #allocation6 [shape = 'u8[65536]{0}', space=vmem, size = 0x10000, scoped, tag = 'input window, operand 7, single buffered']
    %14 = vsyncpa [#allocation3], 0
    %15 = vsyncpa [#allocation5], 0
    // Predicated region
    $region2: #{_lambda_.1} parent=1 // pred_check
      _
    $region3: #{_lambda_.1} parent=1 // pred_check_branch
      %17 = sbr.rel (0) target = $region5
    $region4: #{_lambda_.1} parent=1 // pred_region
      _
    $region5: #{_lambda_.1} parent=1 // pred_fallthru
      _
    // Predicated region
    $region6: #{_lambda_.1} parent=1 // pred_check
      _
    $region7: #{_lambda_.1} parent=1 // pred_check_branch
      %19 = sbr.rel (0) target = $region9
    $region8: #{_lambda_.1} parent=1 // pred_region
      _
    $region9: #{_lambda_.1} parent=1 // pred_fallthru
      _
    // Predicated region
    $region10: #{_lambda_.1} parent=1 // pred_check
      _
    $region11: #{_lambda_.1} parent=1 // pred_check_branch
      %21 = sbr.rel (0) target = $region13
    $region12: #{_lambda_.1} parent=1 // pred_region
      _
    $region13: #{_lambda_.1} parent=1 // pred_fallthru
      _
    // Predicated region
    $region14: #{_lambda_.1} parent=1 // pred_check
      _
    $region15: #{_lambda_.1} parent=1 // pred_check_branch
      %23 = sbr.rel (0) target = $region17
    $region16: #{_lambda_.1} parent=1 // pred_region
      %25 = vsyncadd [#allocation3], 0
      %s26 = sshll.u32 %s3, 4
      %s27 = int_to_ptr.hbm [resolvable:$true] %s26
      %s28 = sshll.u32 [#allocation2], 4
      %s29 = int_to_ptr.vmem [resolvable:$true] %s28
      %34 = dma.hbm_to_vmem [thread:$0]  %s27, 4096, %s29, [#allocation3], 128, 128, 8
    $region17: #{_lambda_.1} parent=1 // pred_fallthru
      _
    // Predicated region
    $region18: #{_lambda_.1} parent=1 // pred_check
      _
    $region19: #{_lambda_.1} parent=1 // pred_check_branch
      %36 = sbr.rel (0) target = $region21
    $region20: #{_lambda_.1} parent=1 // pred_region
      _
    $region21: #{_lambda_.1} parent=1 // pred_fallthru
      _
    // Predicated region
    $region22: #{_lambda_.1} parent=1 // pred_check
      _
    $region23: #{_lambda_.1} parent=1 // pred_check_branch
      %38 = sbr.rel (0) target = $region25
    $region24: #{_lambda_.1} parent=1 // pred_region
      %40 = vsyncadd [#allocation5], 0
      %s41 = sshll.u32 %s5, 4
      %s42 = int_to_ptr.hbm [resolvable:$true] %s41
      %s43 = sshll.u32 [#allocation4], 4
      %s44 = int_to_ptr.vmem [resolvable:$true] %s43
      %49 = dma.hbm_to_vmem [thread:$0]  %s42, 4096, %s44, [#allocation5], 128, 128, 8
    $region25: #{_lambda_.1} parent=1 // pred_fallthru
      _
    // Predicated region
    $region26: #{_lambda_.1} parent=1 // pred_check
      _
    $region27: #{_lambda_.1} parent=1 // pred_check_branch
      %51 = sbr.rel (0) target = $region29
    $region28: #{_lambda_.1} parent=1 // pred_region
      _
    $region29: #{_lambda_.1} parent=1 // pred_fallthru
      _
    // Predicated region
    $region30: #{_lambda_.1} parent=1 // pred_check
      _
    $region31: #{_lambda_.1} parent=1 // pred_check_branch
      %53 = sbr.rel (0) target = $region33
    $region32: #{_lambda_.1} parent=1 // pred_region
      %55 = vsyncadd [#allocation5], 0
      %s56 = sshll.u32 %s7, 4
      %s57 = int_to_ptr.hbm [resolvable:$true] %s56
      %s58 = sshll.u32 [#allocation6], 4
      %s59 = int_to_ptr.vmem [resolvable:$true] %s58
      %64 = dma.hbm_to_vmem [thread:$0]  %s57, 2048, %s59, [#allocation5], 64, 64, 4
    $region33: #{_lambda_.1} parent=1 // pred_fallthru
      _
    // Predicated region
    $region34: #{_lambda_.1} parent=1 // pred_check
      _
    $region35: #{_lambda_.1} parent=1 // pred_check_branch
      %66 = sbr.rel (0) target = $region37
    $region36: #{_lambda_.1} parent=1 // pred_region
      _
    $region37: #{_lambda_.1} parent=1 // pred_fallthru
      _
    // Predicated region
    $region38: #{_lambda_.1} parent=1 // pred_check
      _
    $region39: #{_lambda_.1} parent=1 // pred_check_branch
      %68 = sbr.rel (0) target = $region41
    $region40: #{_lambda_.1} parent=1 // pred_region
      %70 = dma.done [#allocation3], 4096
    $region41: #{_lambda_.1} parent=1 // pred_fallthru
      _
    // Predicated region
    $region42: #{_lambda_.1} parent=1 // pred_check
      _
    $region43: #{_lambda_.1} parent=1 // pred_check_branch
      %72 = sbr.rel (0) target = $region45
    $region44: #{_lambda_.1} parent=1 // pred_region
      %74 = dma.done [#allocation5], 4096
    $region45: #{_lambda_.1} parent=1 // pred_fallthru
      _
    // Predicated region
    $region46: #{_lambda_.1} parent=1 // pred_check
      _
    $region47: #{_lambda_.1} parent=1 // pred_check_branch
      %76 = sbr.rel (0) target = $region49
    $region48: #{_lambda_.1} parent=1 // pred_region
      %78 = dma.done [#allocation5], 2048
    $region49: #{_lambda_.1} parent=1 // pred_fallthru
      _
    %v80 = vld [vmem:[%s0] sm:$0xf]
    %v81 = vld [vmem:[%s0 + $0x4] sm:$0xf]
    %v82 = vld [vmem:[%s1] sm:$0xff]
    %v83 = vld [vmem:[%s1 + $0x8] sm:$0xff]
    %v84 = vld [vmem:[%s1 + $0x10] sm:$0xff]
    %v85 = vld [vmem:[%s1 + $0x18] sm:$0xff]
    %v86 = vld [vmem:[%s1 + $0x20] sm:$0xff]
    %v87 = vld [vmem:[%s1 + $0x28] sm:$0xff]
    %v88 = vld [vmem:[%s2] sm:$0x3]
    %v90 = vperm.slane %v88, 0
    %v91 = vperm.slane %v88, 1
    %v96 = vunpack.c.l.b16 %v80
    %v97 = vunpack.c.l.b16 %v81
    %v98 = vpack.c.b16 %v97, %v96
    %v105 = vunpack.c.l.b16 %v82
    %v106 = vunpack.c.h.b16 %v82
    %v107 = vunpack.c.l.b16 %v83
    %v108 = vunpack.c.h.b16 %v83
    %v109 = vunpack.c.l.b16 %v84
    %v110 = vunpack.c.h.b16 %v84
    %v111 = vunpack.c.l.b16 %v85
    %v112 = vunpack.c.h.b16 %v85
    %v113 = vunpack.c.l.b16 %v86
    %v114 = vunpack.c.h.b16 %v86
    %v115 = vunpack.c.l.b16 %v87
    %v116 = vunpack.c.h.b16 %v87
    %v117 = vpack.c.b16 %v107, %v105
    %v118 = vpack.c.b16 %v108, %v106
    %v119 = vpack.c.b16 %v111, %v109
    %v120 = vpack.c.b16 %v112, %v110
    %v121 = vpack.c.b16 %v115, %v113
    %v122 = vpack.c.b16 %v116, %v114
    %vm129 = vcmask 392192
    %v131 = vsel %vm129, %v98, 0
    %133 = vmatpush.bf16.msra.mxu0 0
    %134 = vmatpush.bf16.msra.mxu0 0
    %135 = vmatpush.bf16.msra.mxu0 0
    %136 = vmatpush.bf16.msra.mxu0 0
    %137 = vmatpush.bf16.msra.mxu0 0
    %138 = vmatpush.bf16.msra.mxu0 %v121
    %139 = vmatpush.bf16.msra.mxu0 %v119
    %140 = vmatpush.bf16.msra.mxu0 %v117
    %141 = vmatmul.bf16.gmra.mxu0 %v131
    %v142 = vpop.f32.mrf.mxu0
    %v143 = vadd.f32 %v90, %v142
    %v144 = vpop.f32.mrf.mxu0
    %v145 = vadd.f32 %v90, %v144
    %146 = vdwg.mxu0
    %147 = vmatpush.bf16.msra.mxu0 0
    %148 = vmatpush.bf16.msra.mxu0 0
    %149 = vmatpush.bf16.msra.mxu0 0
    %150 = vmatpush.bf16.msra.mxu0 0
    %151 = vmatpush.bf16.msra.mxu0 0
    %152 = vmatpush.bf16.msra.mxu0 %v122
    %153 = vmatpush.bf16.msra.mxu0 %v120
    %154 = vmatpush.bf16.msra.mxu0 %v118
    %155 = vmatmul.bf16.gmra.mxu0 %v131
    %v156 = vpop.f32.mrf.mxu0
    %v157 = vadd.f32 %v91, %v156
    %v158 = vpop.f32.mrf.mxu0
    %v159 = vadd.f32 %v91, %v158
    %160 = vdwg.mxu0
    %v161 = vmax.f32 %v143, 0.0
    %v162 = vmax.f32 %v157, 0.0
    %v163 = vmax.f32 %v145, 0.0
    %v164 = vmax.f32 %v159, 0.0
    %v165 = vpack.c.bf16 %v163, %v161
    %v166 = vpack.c.bf16 %v164, %v162
    %v167 = vld [vmem:[#allocation2] sm:$0xff]
    %v168 = vld [vmem:[#allocation2 + $0x8] sm:$0xff]
    %v169 = vld [vmem:[#allocation2 + $0x10] sm:$0xff]
    %v170 = vld [vmem:[#allocation2 + $0x18] sm:$0xff]
    %v171 = vld [vmem:[#allocation2 + $0x20] sm:$0xff]
    %v172 = vld [vmem:[#allocation2 + $0x28] sm:$0xff]
    %v173 = vld [vmem:[#allocation2 + $0x30] sm:$0xff]
    %v174 = vld [vmem:[#allocation2 + $0x38] sm:$0xff]
    %v175 = vld [vmem:[#allocation2 + $0x40] sm:$0xff]
    %v176 = vld [vmem:[#allocation2 + $0x48] sm:$0xff]
    %v177 = vld [vmem:[#allocation2 + $0x50] sm:$0xff]
    %v178 = vld [vmem:[#allocation2 + $0x58] sm:$0xff]
    %v179 = vld [vmem:[#allocation2 + $0x60] sm:$0xff]
    %v180 = vld [vmem:[#allocation2 + $0x68] sm:$0xff]
    %v181 = vld [vmem:[#allocation2 + $0x70] sm:$0xff]
    %v182 = vld [vmem:[#allocation2 + $0x78] sm:$0xff]
    %v183 = vld [vmem:[#allocation2 + $0x80] sm:$0xff]
    %v184 = vld [vmem:[#allocation2 + $0x88] sm:$0xff]
    %v185 = vld [vmem:[#allocation2 + $0x90] sm:$0xff]
    %v186 = vld [vmem:[#allocation2 + $0x98] sm:$0xff]
    %v187 = vld [vmem:[#allocation2 + $0xa0] sm:$0xff]
    %v188 = vld [vmem:[#allocation2 + $0xa8] sm:$0xff]
    %v189 = vld [vmem:[#allocation2 + $0xb0] sm:$0xff]
    %v190 = vld [vmem:[#allocation2 + $0xb8] sm:$0xff]
    %v191 = vld [vmem:[#allocation2 + $0xc0] sm:$0xff]
    %v192 = vld [vmem:[#allocation2 + $0xc8] sm:$0xff]
    %v193 = vld [vmem:[#allocation2 + $0xd0] sm:$0xff]
    %v194 = vld [vmem:[#allocation2 + $0xd8] sm:$0xff]
    %v195 = vld [vmem:[#allocation2 + $0xe0] sm:$0xff]
    %v196 = vld [vmem:[#allocation2 + $0xe8] sm:$0xff]
    %v197 = vld [vmem:[#allocation2 + $0xf0] sm:$0xff]
    %v198 = vld [vmem:[#allocation2 + $0xf8] sm:$0xff]
    %v199 = vld [vmem:[%s4] sm:$0x3]
    %v201 = vperm.slane %v199, 0
    %v202 = vperm.slane %v199, 1
    %v237 = vunpack.c.l.b16 %v167
    %v238 = vunpack.c.h.b16 %v167
    %v239 = vunpack.c.l.b16 %v168
    %v240 = vunpack.c.h.b16 %v168
    %v241 = vunpack.c.l.b16 %v169
    %v242 = vunpack.c.h.b16 %v169
    %v243 = vunpack.c.l.b16 %v170
    %v244 = vunpack.c.h.b16 %v170
    %v245 = vunpack.c.l.b16 %v171
    %v246 = vunpack.c.h.b16 %v171
    %v247 = vunpack.c.l.b16 %v172
    %v248 = vunpack.c.h.b16 %v172
    %v249 = vunpack.c.l.b16 %v173
    %v250 = vunpack.c.h.b16 %v173
    %v251 = vunpack.c.l.b16 %v174
    %v252 = vunpack.c.h.b16 %v174
    %v253 = vunpack.c.l.b16 %v175
    %v254 = vunpack.c.h.b16 %v175
    %v255 = vunpack.c.l.b16 %v176
    %v256 = vunpack.c.h.b16 %v176
    %v257 = vunpack.c.l.b16 %v177
    %v258 = vunpack.c.h.b16 %v177
    %v259 = vunpack.c.l.b16 %v178
    %v260 = vunpack.c.h.b16 %v178
    %v261 = vunpack.c.l.b16 %v179
    %v262 = vunpack.c.h.b16 %v179
    %v263 = vunpack.c.l.b16 %v180
    %v264 = vunpack.c.h.b16 %v180
    %v265 = vunpack.c.l.b16 %v181
    %v266 = vunpack.c.h.b16 %v181
    %v267 = vunpack.c.l.b16 %v182
    %v268 = vunpack.c.h.b16 %v182
    %v269 = vunpack.c.l.b16 %v183
    %v270 = vunpack.c.h.b16 %v183
    %v271 = vunpack.c.l.b16 %v184
    %v272 = vunpack.c.h.b16 %v184
    %v273 = vunpack.c.l.b16 %v185
    %v274 = vunpack.c.h.b16 %v185
    %v275 = vunpack.c.l.b16 %v186
    %v276 = vunpack.c.h.b16 %v186
    %v277 = vunpack.c.l.b16 %v187
    %v278 = vunpack.c.h.b16 %v187
    %v279 = vunpack.c.l.b16 %v188
    %v280 = vunpack.c.h.b16 %v188
    %v281 = vunpack.c.l.b16 %v189
    %v282 = vunpack.c.h.b16 %v189
    %v283 = vunpack.c.l.b16 %v190
    %v284 = vunpack.c.h.b16 %v190
    %v285 = vunpack.c.l.b16 %v191
    %v286 = vunpack.c.h.b16 %v191
    %v287 = vunpack.c.l.b16 %v192
    %v288 = vunpack.c.h.b16 %v192
    %v289 = vunpack.c.l.b16 %v193
    %v290 = vunpack.c.h.b16 %v193
    %v291 = vunpack.c.l.b16 %v194
    %v292 = vunpack.c.h.b16 %v194
    %v293 = vunpack.c.l.b16 %v195
    %v294 = vunpack.c.h.b16 %v195
    %v295 = vunpack.c.l.b16 %v196
    %v296 = vunpack.c.h.b16 %v196
    %v297 = vunpack.c.l.b16 %v197
    %v298 = vunpack.c.h.b16 %v197
    %v299 = vunpack.c.l.b16 %v198
    %v300 = vunpack.c.h.b16 %v198
    %v301 = vpack.c.b16 %v239, %v237
    %v302 = vpack.c.b16 %v240, %v238
    %v303 = vpack.c.b16 %v243, %v241
    %v304 = vpack.c.b16 %v244, %v242
    %v305 = vpack.c.b16 %v247, %v245
    %v306 = vpack.c.b16 %v248, %v246
    %v307 = vpack.c.b16 %v251, %v249
    %v308 = vpack.c.b16 %v252, %v250
    %v309 = vpack.c.b16 %v255, %v253
    %v310 = vpack.c.b16 %v256, %v254
    %v311 = vpack.c.b16 %v259, %v257
    %v312 = vpack.c.b16 %v260, %v258
    %v313 = vpack.c.b16 %v263, %v261
    %v314 = vpack.c.b16 %v264, %v262
    %v315 = vpack.c.b16 %v267, %v265
    %v316 = vpack.c.b16 %v268, %v266
    %v317 = vpack.c.b16 %v271, %v269
    %v318 = vpack.c.b16 %v272, %v270
    %v319 = vpack.c.b16 %v275, %v273
    %v320 = vpack.c.b16 %v276, %v274
    %v321 = vpack.c.b16 %v279, %v277
    %v322 = vpack.c.b16 %v280, %v278
    %v323 = vpack.c.b16 %v283, %v281
    %v324 = vpack.c.b16 %v284, %v282
    %v325 = vpack.c.b16 %v287, %v285
    %v326 = vpack.c.b16 %v288, %v286
    %v327 = vpack.c.b16 %v291, %v289
    %v328 = vpack.c.b16 %v292, %v290
    %v329 = vpack.c.b16 %v295, %v293
    %v330 = vpack.c.b16 %v296, %v294
    %v331 = vpack.c.b16 %v299, %v297
    %v332 = vpack.c.b16 %v300, %v298
    %365 = vmatpush.bf16.msra.mxu0 %v315
    %366 = vmatpush.bf16.msra.mxu0 %v313
    %367 = vmatpush.bf16.msra.mxu0 %v311
    %368 = vmatpush.bf16.msra.mxu0 %v309
    %369 = vmatpush.bf16.msra.mxu0 %v307
    %370 = vmatpush.bf16.msra.mxu0 %v305
    %371 = vmatpush.bf16.msra.mxu0 %v303
    %372 = vmatpush.bf16.msra.mxu0 %v301
    %373 = vmatmul.bf16.gmra.mxu0 %v165
    %v374 = vpop.f32.mrf.mxu0
    %v375 = vadd.f32 %v201, %v374
    %v376 = vpop.f32.mrf.mxu0
    %v377 = vadd.f32 %v201, %v376
    %378 = vdwg.mxu0
    %379 = vmatpush.bf16.msra.mxu0 %v331
    %380 = vmatpush.bf16.msra.mxu0 %v329
    %381 = vmatpush.bf16.msra.mxu0 %v327
    %382 = vmatpush.bf16.msra.mxu0 %v325
    %383 = vmatpush.bf16.msra.mxu0 %v323
    %384 = vmatpush.bf16.msra.mxu0 %v321
    %385 = vmatpush.bf16.msra.mxu0 %v319
    %386 = vmatpush.bf16.msra.mxu0 %v317
    %387 = vmatmul.bf16.gmra.mxu0 %v166
    %v388 = vpop.f32.mrf.mxu0
    %v389 = vadd.f32 %v375, %v388
    %v390 = vpop.f32.mrf.mxu0
    %v391 = vadd.f32 %v377, %v390
    %392 = vdwg.mxu0
    %393 = vmatpush.bf16.msra.mxu0 %v316
    %394 = vmatpush.bf16.msra.mxu0 %v314
    %395 = vmatpush.bf16.msra.mxu0 %v312
    %396 = vmatpush.bf16.msra.mxu0 %v310
    %397 = vmatpush.bf16.msra.mxu0 %v308
    %398 = vmatpush.bf16.msra.mxu0 %v306
    %399 = vmatpush.bf16.msra.mxu0 %v304
    %400 = vmatpush.bf16.msra.mxu0 %v302
    %401 = vmatmul.bf16.gmra.mxu0 %v165
    %v402 = vpop.f32.mrf.mxu0
    %v403 = vadd.f32 %v202, %v402
    %v404 = vpop.f32.mrf.mxu0
    %v405 = vadd.f32 %v202, %v404
    %406 = vdwg.mxu0
    %407 = vmatpush.bf16.msra.mxu0 %v332
    %408 = vmatpush.bf16.msra.mxu0 %v330
    %409 = vmatpush.bf16.msra.mxu0 %v328
    %410 = vmatpush.bf16.msra.mxu0 %v326
    %411 = vmatpush.bf16.msra.mxu0 %v324
    %412 = vmatpush.bf16.msra.mxu0 %v322
    %413 = vmatpush.bf16.msra.mxu0 %v320
    %414 = vmatpush.bf16.msra.mxu0 %v318
    %415 = vmatmul.bf16.gmra.mxu0 %v166
    %v416 = vpop.f32.mrf.mxu0
    %v417 = vadd.f32 %v403, %v416
    %v418 = vpop.f32.mrf.mxu0
    %v419 = vadd.f32 %v405, %v418
    %420 = vdwg.mxu0
    %v421 = vmax.f32 %v389, 0.0
    %v422 = vmax.f32 %v417, 0.0
    %v423 = vmax.f32 %v391, 0.0
    %v424 = vmax.f32 %v419, 0.0
    %v425 = vpack.c.bf16 %v423, %v421
    %v426 = vpack.c.bf16 %v424, %v422
    %v427 = vld [vmem:[#allocation4] sm:$0xff]
    %v428 = vld [vmem:[#allocation4 + $0x8] sm:$0xff]
    %v429 = vld [vmem:[#allocation4 + $0x10] sm:$0xff]
    %v430 = vld [vmem:[#allocation4 + $0x18] sm:$0xff]
    %v431 = vld [vmem:[#allocation4 + $0x20] sm:$0xff]
    %v432 = vld [vmem:[#allocation4 + $0x28] sm:$0xff]
    %v433 = vld [vmem:[#allocation4 + $0x30] sm:$0xff]
    %v434 = vld [vmem:[#allocation4 + $0x38] sm:$0xff]
    %v435 = vld [vmem:[#allocation4 + $0x40] sm:$0xff]
    %v436 = vld [vmem:[#allocation4 + $0x48] sm:$0xff]
    %v437 = vld [vmem:[#allocation4 + $0x50] sm:$0xff]
    %v438 = vld [vmem:[#allocation4 + $0x58] sm:$0xff]
    %v439 = vld [vmem:[#allocation4 + $0x60] sm:$0xff]
    %v440 = vld [vmem:[#allocation4 + $0x68] sm:$0xff]
    %v441 = vld [vmem:[#allocation4 + $0x70] sm:$0xff]
    %v442 = vld [vmem:[#allocation4 + $0x78] sm:$0xff]
    %v443 = vld [vmem:[#allocation4 + $0x80] sm:$0xff]
    %v444 = vld [vmem:[#allocation4 + $0x88] sm:$0xff]
    %v445 = vld [vmem:[#allocation4 + $0x90] sm:$0xff]
    %v446 = vld [vmem:[#allocation4 + $0x98] sm:$0xff]
    %v447 = vld [vmem:[#allocation4 + $0xa0] sm:$0xff]
    %v448 = vld [vmem:[#allocation4 + $0xa8] sm:$0xff]
    %v449 = vld [vmem:[#allocation4 + $0xb0] sm:$0xff]
    %v450 = vld [vmem:[#allocation4 + $0xb8] sm:$0xff]
    %v451 = vld [vmem:[#allocation4 + $0xc0] sm:$0xff]
    %v452 = vld [vmem:[#allocation4 + $0xc8] sm:$0xff]
    %v453 = vld [vmem:[#allocation4 + $0xd0] sm:$0xff]
    %v454 = vld [vmem:[#allocation4 + $0xd8] sm:$0xff]
    %v455 = vld [vmem:[#allocation4 + $0xe0] sm:$0xff]
    %v456 = vld [vmem:[#allocation4 + $0xe8] sm:$0xff]
    %v457 = vld [vmem:[#allocation4 + $0xf0] sm:$0xff]
    %v458 = vld [vmem:[#allocation4 + $0xf8] sm:$0xff]
    %v459 = vld [vmem:[%s6] sm:$0x3]
    %v461 = vperm.slane %v459, 0
    %v462 = vperm.slane %v459, 1
    %v497 = vunpack.c.l.b16 %v427
    %v498 = vunpack.c.h.b16 %v427
    %v499 = vunpack.c.l.b16 %v428
    %v500 = vunpack.c.h.b16 %v428
    %v501 = vunpack.c.l.b16 %v429
    %v502 = vunpack.c.h.b16 %v429
    %v503 = vunpack.c.l.b16 %v430
    %v504 = vunpack.c.h.b16 %v430
    %v505 = vunpack.c.l.b16 %v431
    %v506 = vunpack.c.h.b16 %v431
    %v507 = vunpack.c.l.b16 %v432
    %v508 = vunpack.c.h.b16 %v432
    %v509 = vunpack.c.l.b16 %v433
    %v510 = vunpack.c.h.b16 %v433
    %v511 = vunpack.c.l.b16 %v434
    %v512 = vunpack.c.h.b16 %v434
    %v513 = vunpack.c.l.b16 %v435
    %v514 = vunpack.c.h.b16 %v435
    %v515 = vunpack.c.l.b16 %v436
    %v516 = vunpack.c.h.b16 %v436
    %v517 = vunpack.c.l.b16 %v437
    %v518 = vunpack.c.h.b16 %v437
    %v519 = vunpack.c.l.b16 %v438
    %v520 = vunpack.c.h.b16 %v438
    %v521 = vunpack.c.l.b16 %v439
    %v522 = vunpack.c.h.b16 %v439
    %v523 = vunpack.c.l.b16 %v440
    %v524 = vunpack.c.h.b16 %v440
    %v525 = vunpack.c.l.b16 %v441
    %v526 = vunpack.c.h.b16 %v441
    %v527 = vunpack.c.l.b16 %v442
    %v528 = vunpack.c.h.b16 %v442
    %v529 = vunpack.c.l.b16 %v443
    %v530 = vunpack.c.h.b16 %v443
    %v531 = vunpack.c.l.b16 %v444
    %v532 = vunpack.c.h.b16 %v444
    %v533 = vunpack.c.l.b16 %v445
    %v534 = vunpack.c.h.b16 %v445
    %v535 = vunpack.c.l.b16 %v446
    %v536 = vunpack.c.h.b16 %v446
    %v537 = vunpack.c.l.b16 %v447
    %v538 = vunpack.c.h.b16 %v447
    %v539 = vunpack.c.l.b16 %v448
    %v540 = vunpack.c.h.b16 %v448
    %v541 = vunpack.c.l.b16 %v449
    %v542 = vunpack.c.h.b16 %v449
    %v543 = vunpack.c.l.b16 %v450
    %v544 = vunpack.c.h.b16 %v450
    %v545 = vunpack.c.l.b16 %v451
    %v546 = vunpack.c.h.b16 %v451
    %v547 = vunpack.c.l.b16 %v452
    %v548 = vunpack.c.h.b16 %v452
    %v549 = vunpack.c.l.b16 %v453
    %v550 = vunpack.c.h.b16 %v453
    %v551 = vunpack.c.l.b16 %v454
    %v552 = vunpack.c.h.b16 %v454
    %v553 = vunpack.c.l.b16 %v455
    %v554 = vunpack.c.h.b16 %v455
    %v555 = vunpack.c.l.b16 %v456
    %v556 = vunpack.c.h.b16 %v456
    %v557 = vunpack.c.l.b16 %v457
    %v558 = vunpack.c.h.b16 %v457
    %v559 = vunpack.c.l.b16 %v458
    %v560 = vunpack.c.h.b16 %v458
    %v561 = vpack.c.b16 %v499, %v497
    %v562 = vpack.c.b16 %v500, %v498
    %v563 = vpack.c.b16 %v503, %v501
    %v564 = vpack.c.b16 %v504, %v502
    %v565 = vpack.c.b16 %v507, %v505
    %v566 = vpack.c.b16 %v508, %v506
    %v567 = vpack.c.b16 %v511, %v509
    %v568 = vpack.c.b16 %v512, %v510
    %v569 = vpack.c.b16 %v515, %v513
    %v570 = vpack.c.b16 %v516, %v514
    %v571 = vpack.c.b16 %v519, %v517
    %v572 = vpack.c.b16 %v520, %v518
    %v573 = vpack.c.b16 %v523, %v521
    %v574 = vpack.c.b16 %v524, %v522
    %v575 = vpack.c.b16 %v527, %v525
    %v576 = vpack.c.b16 %v528, %v526
    %v577 = vpack.c.b16 %v531, %v529
    %v578 = vpack.c.b16 %v532, %v530
    %v579 = vpack.c.b16 %v535, %v533
    %v580 = vpack.c.b16 %v536, %v534
    %v581 = vpack.c.b16 %v539, %v537
    %v582 = vpack.c.b16 %v540, %v538
    %v583 = vpack.c.b16 %v543, %v541
    %v584 = vpack.c.b16 %v544, %v542
    %v585 = vpack.c.b16 %v547, %v545
    %v586 = vpack.c.b16 %v548, %v546
    %v587 = vpack.c.b16 %v551, %v549
    %v588 = vpack.c.b16 %v552, %v550
    %v589 = vpack.c.b16 %v555, %v553
    %v590 = vpack.c.b16 %v556, %v554
    %v591 = vpack.c.b16 %v559, %v557
    %v592 = vpack.c.b16 %v560, %v558
    %625 = vmatpush.bf16.msra.mxu0 %v575
    %626 = vmatpush.bf16.msra.mxu0 %v573
    %627 = vmatpush.bf16.msra.mxu0 %v571
    %628 = vmatpush.bf16.msra.mxu0 %v569
    %629 = vmatpush.bf16.msra.mxu0 %v567
    %630 = vmatpush.bf16.msra.mxu0 %v565
    %631 = vmatpush.bf16.msra.mxu0 %v563
    %632 = vmatpush.bf16.msra.mxu0 %v561
    %633 = vmatmul.bf16.gmra.mxu0 %v425
    %v634 = vpop.f32.mrf.mxu0
    %v635 = vadd.f32 %v461, %v634
    %v636 = vpop.f32.mrf.mxu0
    %v637 = vadd.f32 %v461, %v636
    %638 = vdwg.mxu0
    %639 = vmatpush.bf16.msra.mxu0 %v591
    %640 = vmatpush.bf16.msra.mxu0 %v589
    %641 = vmatpush.bf16.msra.mxu0 %v587
    %642 = vmatpush.bf16.msra.mxu0 %v585
    %643 = vmatpush.bf16.msra.mxu0 %v583
    %644 = vmatpush.bf16.msra.mxu0 %v581
    %645 = vmatpush.bf16.msra.mxu0 %v579
    %646 = vmatpush.bf16.msra.mxu0 %v577
    %647 = vmatmul.bf16.gmra.mxu0 %v426
    %v648 = vpop.f32.mrf.mxu0
    %v649 = vadd.f32 %v635, %v648
    %v650 = vpop.f32.mrf.mxu0
    %v651 = vadd.f32 %v637, %v650
    %652 = vdwg.mxu0
    %653 = vmatpush.bf16.msra.mxu0 %v576
    %654 = vmatpush.bf16.msra.mxu0 %v574
    %655 = vmatpush.bf16.msra.mxu0 %v572
    %656 = vmatpush.bf16.msra.mxu0 %v570
    %657 = vmatpush.bf16.msra.mxu0 %v568
    %658 = vmatpush.bf16.msra.mxu0 %v566
    %659 = vmatpush.bf16.msra.mxu0 %v564
    %660 = vmatpush.bf16.msra.mxu0 %v562
    %661 = vmatmul.bf16.gmra.mxu0 %v425
    %v662 = vpop.f32.mrf.mxu0
    %v663 = vadd.f32 %v462, %v662
    %v664 = vpop.f32.mrf.mxu0
    %v665 = vadd.f32 %v462, %v664
    %666 = vdwg.mxu0
    %667 = vmatpush.bf16.msra.mxu0 %v592
    %668 = vmatpush.bf16.msra.mxu0 %v590
    %669 = vmatpush.bf16.msra.mxu0 %v588
    %670 = vmatpush.bf16.msra.mxu0 %v586
    %671 = vmatpush.bf16.msra.mxu0 %v584
    %672 = vmatpush.bf16.msra.mxu0 %v582
    %673 = vmatpush.bf16.msra.mxu0 %v580
    %674 = vmatpush.bf16.msra.mxu0 %v578
    %675 = vmatmul.bf16.gmra.mxu0 %v426
    %v676 = vpop.f32.mrf.mxu0
    %v677 = vadd.f32 %v663, %v676
    %v678 = vpop.f32.mrf.mxu0
    %v679 = vadd.f32 %v665, %v678
    %680 = vdwg.mxu0
    %v681 = vmax.f32 %v649, 0.0
    %v682 = vmax.f32 %v677, 0.0
    %v683 = vmax.f32 %v651, 0.0
    %v684 = vmax.f32 %v679, 0.0
    %v685 = vpack.c.bf16 %v683, %v681
    %v686 = vpack.c.bf16 %v684, %v682
    %v687 = vld [vmem:[#allocation6] sm:$0xf]
    %v688 = vld [vmem:[#allocation6 + $0x4] sm:$0xf]
    %v689 = vld [vmem:[#allocation6 + $0x8] sm:$0xf]
    %v690 = vld [vmem:[#allocation6 + $0xc] sm:$0xf]
    %v691 = vld [vmem:[#allocation6 + $0x10] sm:$0xf]
    %v692 = vld [vmem:[#allocation6 + $0x14] sm:$0xf]
    %v693 = vld [vmem:[#allocation6 + $0x18] sm:$0xf]
    %v694 = vld [vmem:[#allocation6 + $0x1c] sm:$0xf]
    %v695 = vld [vmem:[#allocation6 + $0x20] sm:$0xf]
    %v696 = vld [vmem:[#allocation6 + $0x24] sm:$0xf]
    %v697 = vld [vmem:[#allocation6 + $0x28] sm:$0xf]
    %v698 = vld [vmem:[#allocation6 + $0x2c] sm:$0xf]
    %v699 = vld [vmem:[#allocation6 + $0x30] sm:$0xf]
    %v700 = vld [vmem:[#allocation6 + $0x34] sm:$0xf]
    %v701 = vld [vmem:[#allocation6 + $0x38] sm:$0xf]
    %v702 = vld [vmem:[#allocation6 + $0x3c] sm:$0xf]
    %v703 = vld [vmem:[#allocation6 + $0x40] sm:$0xf]
    %v704 = vld [vmem:[#allocation6 + $0x44] sm:$0xf]
    %v705 = vld [vmem:[#allocation6 + $0x48] sm:$0xf]
    %v706 = vld [vmem:[#allocation6 + $0x4c] sm:$0xf]
    %v707 = vld [vmem:[#allocation6 + $0x50] sm:$0xf]
    %v708 = vld [vmem:[#allocation6 + $0x54] sm:$0xf]
    %v709 = vld [vmem:[#allocation6 + $0x58] sm:$0xf]
    %v710 = vld [vmem:[#allocation6 + $0x5c] sm:$0xf]
    %v711 = vld [vmem:[#allocation6 + $0x60] sm:$0xf]
    %v712 = vld [vmem:[#allocation6 + $0x64] sm:$0xf]
    %v713 = vld [vmem:[#allocation6 + $0x68] sm:$0xf]
    %v714 = vld [vmem:[#allocation6 + $0x6c] sm:$0xf]
    %v715 = vld [vmem:[#allocation6 + $0x70] sm:$0xf]
    %v716 = vld [vmem:[#allocation6 + $0x74] sm:$0xf]
    %v717 = vld [vmem:[#allocation6 + $0x78] sm:$0xf]
    %v718 = vld [vmem:[#allocation6 + $0x7c] sm:$0xf]
    %v719 = vld [vmem:[%s8] sm:$0x1]
    %v721 = vperm.slane %v719, 0
    %v755 = vunpack.c.l.b16 %v687
    %v756 = vunpack.c.l.b16 %v688
    %v757 = vunpack.c.l.b16 %v689
    %v758 = vunpack.c.l.b16 %v690
    %v759 = vunpack.c.l.b16 %v691
    %v760 = vunpack.c.l.b16 %v692
    %v761 = vunpack.c.l.b16 %v693
    %v762 = vunpack.c.l.b16 %v694
    %v763 = vunpack.c.l.b16 %v695
    %v764 = vunpack.c.l.b16 %v696
    %v765 = vunpack.c.l.b16 %v697
    %v766 = vunpack.c.l.b16 %v698
    %v767 = vunpack.c.l.b16 %v699
    %v768 = vunpack.c.l.b16 %v700
    %v769 = vunpack.c.l.b16 %v701
    %v770 = vunpack.c.l.b16 %v702
    %v771 = vunpack.c.l.b16 %v703
    %v772 = vunpack.c.l.b16 %v704
    %v773 = vunpack.c.l.b16 %v705
    %v774 = vunpack.c.l.b16 %v706
    %v775 = vunpack.c.l.b16 %v707
    %v776 = vunpack.c.l.b16 %v708
    %v777 = vunpack.c.l.b16 %v709
    %v778 = vunpack.c.l.b16 %v710
    %v779 = vunpack.c.l.b16 %v711
    %v780 = vunpack.c.l.b16 %v712
    %v781 = vunpack.c.l.b16 %v713
    %v782 = vunpack.c.l.b16 %v714
    %v783 = vunpack.c.l.b16 %v715
    %v784 = vunpack.c.l.b16 %v716
    %v785 = vunpack.c.l.b16 %v717
    %v786 = vunpack.c.l.b16 %v718
    %v787 = vpack.c.b16 %v756, %v755
    %v788 = vpack.c.b16 %v758, %v757
    %v789 = vpack.c.b16 %v760, %v759
    %v790 = vpack.c.b16 %v762, %v761
    %v791 = vpack.c.b16 %v764, %v763
    %v792 = vpack.c.b16 %v766, %v765
    %v793 = vpack.c.b16 %v768, %v767
    %v794 = vpack.c.b16 %v770, %v769
    %v795 = vpack.c.b16 %v772, %v771
    %v796 = vpack.c.b16 %v774, %v773
    %v797 = vpack.c.b16 %v776, %v775
    %v798 = vpack.c.b16 %v778, %v777
    %v799 = vpack.c.b16 %v780, %v779
    %v800 = vpack.c.b16 %v782, %v781
    %v801 = vpack.c.b16 %v784, %v783
    %v802 = vpack.c.b16 %v786, %v785
    %819 = vmatpush.bf16.msra.mxu0 %v794
    %820 = vmatpush.bf16.msra.mxu0 %v793
    %821 = vmatpush.bf16.msra.mxu0 %v792
    %822 = vmatpush.bf16.msra.mxu0 %v791
    %823 = vmatpush.bf16.msra.mxu0 %v790
    %824 = vmatpush.bf16.msra.mxu0 %v789
    %825 = vmatpush.bf16.msra.mxu0 %v788
    %826 = vmatpush.bf16.msra.mxu0 %v787
    %827 = vmatmul.bf16.gmra.mxu0 %v685
    %v828 = vpop.f32.mrf.mxu0
    %v829 = vadd.f32 %v721, %v828
    %v830 = vpop.f32.mrf.mxu0
    %v831 = vadd.f32 %v721, %v830
    %832 = vdwg.mxu0
    %833 = vmatpush.bf16.msra.mxu0 %v802
    %834 = vmatpush.bf16.msra.mxu0 %v801
    %835 = vmatpush.bf16.msra.mxu0 %v800
    %836 = vmatpush.bf16.msra.mxu0 %v799
    %837 = vmatpush.bf16.msra.mxu0 %v798
    %838 = vmatpush.bf16.msra.mxu0 %v797
    %839 = vmatpush.bf16.msra.mxu0 %v796
    %840 = vmatpush.bf16.msra.mxu0 %v795
    %841 = vmatmul.bf16.gmra.mxu0 %v686
    %v842 = vpop.f32.mrf.mxu0
    %v843 = vadd.f32 %v829, %v842
    %v844 = vpop.f32.mrf.mxu0
    %v845 = vadd.f32 %v831, %v844
    %846 = vdwg.mxu0
    %v847 = vtanh.pop %v843
    %v848 = vtanh.pop %v845
    %v849 = vlaneseq
    %v850 = vand.u32 %v849, 127
    %vm851 = vcmp.eq.s32.totalorder %v850, 0
    %853 = vset.pattern.permute.xlu0 0
    %854 = vperm.xlu0 %853, %v847
    %v855 = vpop.permute.xlu0 %854
    %858 = vset.pattern.permute.xlu0 0
    %859 = vperm.xlu0 %858, %v848
    %v860 = vpop.permute.xlu0 %859
    %v862 = vsel %vm851, %v855, %v843
    %v863 = vsel %vm851, %v860, %v845
    %v864 = vpack.c.bf16 %v862, %v862
    %v865 = vpack.c.bf16 %v863, %v863
    %866 = vst [vmem:[%s9] sm:$0xf] %v864
    %867 = vst [vmem:[%s9 + $0x4] sm:$0xf] %v865
    // Predicated region
    $region50: #{_lambda_.1} parent=1 // pred_check
      _
    $region51: #{_lambda_.1} parent=1 // pred_check_branch
      %869 = sbr.rel (0) target = $region53
    $region52: #{_lambda_.1} parent=1 // pred_region
      _
    $region53: #{_lambda_.1} parent=1 // pred_fallthru
      _
    // Predicated region
    $region54: #{_lambda_.1} parent=1 // pred_check
      _
    $region55: #{_lambda_.1} parent=1 // pred_check_branch
      %871 = sbr.rel (0) target = $region57
    $region56: #{_lambda_.1} parent=1 // pred_region
      _
    $region57: #{_lambda_.1} parent=1 // pred_fallthru
      _
    %872 = vsyncpa [#allocation3], 1
    %873 = vsyncpa [#allocation5], 1

</llo_original>
